<compile_context>
chip_gen: v7x
topology: tpu7x:2x2x1
jax: 0.10.0
libtpu: 0.0.40
codegen_flags: <defaults>
</compile_context>

<pallas_src>
import functools

import jax
import jax.numpy as jnp
from jax.experimental import pallas as pl
from jax.experimental.pallas import tpu as pltpu


# ----------------------------------------------------------------------------
# Helpers
# ----------------------------------------------------------------------------
def _round_up(x, m):
    return -(-x // m) * m


def _device_tile_params():
    """(tm_target, tf_target, vmem_limit_bytes) chosen per TPU generation."""
    kind = ""
    try:
        kind = jax.devices()[0].device_kind.lower()
    except Exception:
        pass
    if "v5 lite" in kind or "v5e" in kind or "v5litepod" in kind:
        # v5e: slower MXU (197 TF/s) -> roofline knee ~240 FLOP/byte; TM=256 is enough.
        return 256, 512, 64 * 1024 * 1024
    if "v6" in kind:
        # v6e: 128 MiB VMEM and ~640 FLOP/byte knee -> bigger token tile + VMEM budget.
        return 1024, 512, 96 * 1024 * 1024
    if "v7" in kind:
        # v7x: 64 MiB VMEM per TC -> smaller F tile, tighter limit.
        return 512, 256, 40 * 1024 * 1024
    return 512, 512, 64 * 1024 * 1024


def _choose_tf(F, tf_target):
    """Largest 128-multiple divisor of F that is <= tf_target, else full F."""
    if F <= tf_target:
        return F
    t = (tf_target // 128) * 128
    while t >= 128:
        if F % t == 0:
            return t
        t -= 128
    return F


def _vmem_estimate(tm, tf, d):
    wbytes = 2 * (2 * (d * tf * 2) + tf * d * 2)            # W1,W3,W2 bf16, double-buffered
    iobytes = 2 * (tm * d * 2 + tm * 4) + 2 * (tm * d * 4)  # x,prob in + f32 out tiles
    tmpbytes = 3 * tm * tf * 4                               # h1,h3,h f32 temporaries
    return wbytes + iobytes + tmpbytes


# ----------------------------------------------------------------------------
# Pallas kernel: grouped SWIGLU expert matmuls, F-tiled
# ----------------------------------------------------------------------------
def moe_grouped_swiglu_kernel(te_ref, x_ref, p_ref, w1_ref, w3_ref, w2_ref, y_ref):
    """grid = (token_group_tiles, F_tiles).

    Each token tile holds rows that all belong to one expert (te_ref[t], used
    only by the index_maps).  For F chunk f:
        h_f = silu(x @ W1[:, f]) * (x @ W3[:, f])          (bf16 MXU, f32 math)
        y  += prob * (h_f @ W2[f, :])                       (f32 accumulator)
    Padded rows have x = 0 and prob = 0, so they contribute exactly zero.
    """
    del te_ref  # consumed by the index_maps only
    f = pl.program_id(1)

    @pl.when(f == 0)
    def _():
        y_ref[...] = jnp.zeros_like(y_ref)

    x = x_ref[...]                                                    # (TM, D) bf16
    h1 = jnp.dot(x, w1_ref[0], preferred_element_type=jnp.float32)    # (TM, TF) f32
    h3 = jnp.dot(x, w3_ref[0], preferred_element_type=jnp.float32)    # (TM, TF) f32
    h = (h1 * jax.nn.sigmoid(h1)) * h3                                # SwiGLU chunk, f32
    y = jnp.dot(h.astype(jnp.bfloat16), w2_ref[0],
                preferred_element_type=jnp.float32)                   # (TM, D) f32
    y_ref[...] += p_ref[...] * y


# ----------------------------------------------------------------------------
# Wrapper
# ----------------------------------------------------------------------------
@functools.partial(jax.jit, static_argnames=("k",))
def moe_layer(inputs, wg, w1, w3, w2, *, k):
    """inputs: (B, T, D).  Returns (output (B, T, D), aux_loss, z_loss)."""
    B, T, D = inputs.shape
    N = B * T
    E1, _, F = w1.shape          # E1 = num_experts + 1 (shared expert last)
    E = E1 - 1

    x = inputs.reshape(N, D).astype(jnp.float32)

    # --- gate + routing (tiny GEMM, top-k, softmax) in plain XLA ---------------
    logits = jnp.dot(x, wg.astype(jnp.float32))                    # (N, E)
    topk_scores, topk_idx = jax.lax.top_k(logits, k)               # (N, k)
    probs = jax.nn.softmax(topk_scores, axis=-1)                   # (N, k) f32

    # --- sorted-token grouping --------------------------------------------------
    # Flat assignments: k routed (token, expert, prob) per token + 1 shared
    # assignment per token (expert index E, prob 1.0).
    NK1 = N * (k + 1)
    flat_expert = jnp.concatenate(
        [topk_idx.reshape(-1), jnp.full((N,), E, topk_idx.dtype)])
    flat_token = jnp.concatenate(
        [jnp.repeat(jnp.arange(N, dtype=jnp.int32), k),
         jnp.arange(N, dtype=jnp.int32)])
    flat_prob = jnp.concatenate(
        [probs.reshape(-1), jnp.ones((N,), jnp.float32)])

    order = jnp.argsort(flat_expert)
    sorted_expert = flat_expert[order]
    sorted_token = flat_token[order]
    sorted_prob = flat_prob[order]

    # --- tile sizing (generation aware) -----------------------------------------
    tm_target, tf_target, vmem_limit = _device_tile_params()
    TM = min(tm_target, _round_up(max(-(-NK1 // E1), 8), 8))
    TF = _choose_tf(F, tf_target)
    while TM > 8 and _vmem_estimate(TM, TF, D) > (vmem_limit * 3) // 5:
        TM = _round_up(TM // 2, 8)

    tiles = -(-NK1 // TM) + E1        # static upper bound on padded group tiles
    P = tiles * TM

    # --- per-expert group offsets (dynamic values, static shapes) ---------------
    group_sizes = jnp.zeros((E1,), jnp.int32).at[flat_expert].add(1)
    padded_sizes = ((group_sizes + TM - 1) // TM) * TM
    padded_ends = jnp.cumsum(padded_sizes)
    padded_starts = padded_ends - padded_sizes
    raw_starts = jnp.cumsum(group_sizes) - group_sizes
    rank = jnp.arange(NK1, dtype=jnp.int32) - raw_starts[sorted_expert]
    dest = (padded_starts[sorted_expert] + rank).astype(jnp.int32)

    # Scatter tokens into the tile-aligned, expert-contiguous layout.
    x_b = x.astype(jnp.bfloat16)
    x_pad = jnp.zeros((P, D), jnp.bfloat16).at[dest].set(x_b[sorted_token])
    prob_pad = jnp.zeros((P, 1), jnp.float32).at[dest].set(sorted_prob[:, None])
    out_token = jnp.full((P,), N, jnp.int32).at[dest].set(sorted_token)

    # Per-tile expert id for the scalar-prefetch index_maps.  Tiles past the
    # valid region compute on zero rows (prob 0) and are clamped to a valid id.
    tile_start = jnp.arange(tiles, dtype=jnp.int32) * TM
    tile_expert = jnp.minimum(
        jnp.searchsorted(padded_ends, tile_start, side="right"), E1 - 1
    ).astype(jnp.int32)

    w1b = w1.astype(jnp.bfloat16)
    w3b = w3.astype(jnp.bfloat16)
    w2b = w2.astype(jnp.bfloat16)

    y_pad = pl.pallas_call(
        moe_grouped_swiglu_kernel,
        out_shape=jax.ShapeDtypeStruct((P, D), jnp.float32),
        grid_spec=pltpu.PrefetchScalarGridSpec(
            num_scalar_prefetch=1,
            grid=(tiles, F // TF),                        # (token-group tiles, F tiles)
            in_specs=[
                pl.BlockSpec((TM, D), lambda t, f, te: (t, 0)),            # x tile
                pl.BlockSpec((TM, 1), lambda t, f, te: (t, 0)),            # routing prob
                pl.BlockSpec((1, D, TF), lambda t, f, te: (te[t], 0, f)),  # W1 chunk
                pl.BlockSpec((1, D, TF), lambda t, f, te: (te[t], 0, f)),  # W3 chunk
                pl.BlockSpec((1, TF, D), lambda t, f, te: (te[t], f, 0)),  # W2 chunk
            ],
            out_specs=pl.BlockSpec((TM, D), lambda t, f, te: (t, 0)),      # resident acc
        ),
        compiler_params=pltpu.CompilerParams(
            dimension_semantics=("parallel", "arbitrary"),
            vmem_limit_bytes=vmem_limit,
        ),
    )(tile_expert, x_pad, prob_pad, w1b, w3b, w2b)

    # Combine: scatter-add weighted expert outputs back to token order.  Padded
    # rows map to a dummy row N (dropped) and carry exactly-zero values anyway.
    out = jnp.zeros((N + 1, D), jnp.float32).at[out_token].add(y_pad)[:N]
    out = out.reshape(B, T, D).astype(inputs.dtype)

    # --- aux / z losses (match the PyTorch formulas; scatter-add, no one-hot) ---
    flat_routed = topk_idx.reshape(-1)
    tokens_per_expert = jnp.zeros((E,), jnp.float32).at[flat_routed].add(1.0) / N
    prob_per_expert = (
        jnp.zeros((E,), jnp.float32).at[flat_routed].add(probs.reshape(-1)) / N)
    aux_loss = E * jnp.sum(prob_per_expert * tokens_per_expert)
    z_loss = jnp.mean(jax.nn.logsumexp(logits, axis=-1) ** 2)

    return out, aux_loss, z_loss


# ----------------------------------------------------------------------------
# Pure-JAX reference (mirrors the PyTorch forward, f32 matmuls)
# ----------------------------------------------------------------------------
def moe_reference(inputs, wg, w1, w3, w2, *, k):
    B, T, D = inputs.shape
    N = B * T
    E1 = w1.shape[0]
    E = E1 - 1
    x = inputs.reshape(N, D)
    logits = x @ wg
    topk_scores, topk_idx = jax.lax.top_k(logits, k)
    probs = jax.nn.softmax(topk_scores.astype(jnp.float32), axis=-1)

    def swiglu(xx, e):
        h1 = xx @ w1[e]
        h3 = xx @ w3[e]
        return (h1 * jax.nn.sigmoid(h1) * h3) @ w2[e]

    out = jnp.zeros_like(x)
    for e in range(E):
        sel = (topk_idx == e)                                       # (N, k)
        w = jnp.sum(jnp.where(sel, probs, 0.0), axis=-1, keepdims=True)
        out = out + w * swiglu(x, e)
    out = out + swiglu(x, E)                                        # shared expert
    return out.reshape(B, T, D)


# ----------------------------------------------------------------------------
if __name__ == "__main__":
    # Config consistent with the module: d_model=32, d_ff=64, num_experts=4,
    # k=2, B=2, T=8.
    B, T, D, F, E, K = 2, 8, 32, 64, 4, 2

    key = jax.random.PRNGKey(0)
    k_in, k_g, k_w1, k_w3, k_w2 = jax.random.split(key, 5)

    inputs = jax.random.normal(k_in, (B, T, D), dtype=jnp.float32)
    wg = jax.random.normal(k_g, (D, E), dtype=jnp.float32) * 0.05
    # E routed experts + 1 shared expert stacked along axis 0.
    w1 = jax.random.normal(k_w1, (E + 1, D, F), dtype=jnp.float32) * 0.05
    w3 = jax.random.normal(k_w3, (E + 1, D, F), dtype=jnp.float32) * 0.05
    w2 = jax.random.normal(k_w2, (E + 1, F, D), dtype=jnp.float32) * 0.05

    out, aux_loss, z_loss = moe_layer(inputs, wg, w1, w3, w2, k=K)
    out = jax.block_until_ready(out)

    ref = moe_reference(inputs, wg, w1, w3, w2, k=K)
    assert out.shape == (B, T, D)
    # bf16 MXU matmuls vs f32 reference -> loosened tolerance.
    err = float(jnp.max(jnp.abs(out - ref)))
    assert jnp.allclose(out, ref, atol=5e-3, rtol=5e-2), err
    assert bool(jnp.isfinite(aux_loss)) and bool(jnp.isfinite(z_loss))

    print("KERNEL_OK")
</pallas_src>

<mosaic_0001>
module attributes {stable_mosaic.version = 11 : i64} {
  func.func private @main(%arg0: i32) attributes {dimension_semantics = [#tpu.dimension_semantics<core_parallel>], iteration_bounds = array<i64: 2>, tpu.core_type = #tpu.core_type<sc_scalar_subcore>, window_params = []} {
    return
  }
}

module attributes {stable_mosaic.version = 11 : i64} {
  func.func private @main(%arg0: i32) attributes {dimension_semantics = [#tpu.dimension_semantics<core_parallel>], iteration_bounds = array<i64: 2>, tpu.core_type = #tpu.core_type<sc_scalar_subcore>, window_params = []} {
    return
  }
}

module attributes {stable_mosaic.version = 11 : i64} {
  func.func @moe_grouped_swiglu_kernel(%arg0: i32, %arg1: i32, %arg2: memref<8xi32, #tpu.memory_space<smem>>, %arg3: memref<16x32xbf16, #tpu.memory_space<vmem>>, %arg4: memref<16x1xf32, #tpu.memory_space<vmem>>, %arg5: memref<1x32x64xbf16, #tpu.memory_space<vmem>>, %arg6: memref<1x32x64xbf16, #tpu.memory_space<vmem>>, %arg7: memref<1x64x32xbf16, #tpu.memory_space<vmem>>, %arg8: memref<16x32xf32, #tpu.memory_space<vmem>>) attributes {dimension_semantics = [#tpu.dimension_semantics<parallel>, #tpu.dimension_semantics<arbitrary>], iteration_bounds = array<i64: 8, 1>, scalar_prefetch = 1 : i64, scratch_operands = 0 : i64, tpu.core_type = #tpu.core_type<tc>, window_params = [{transform_indices = @transform_0, window_bounds = array<i64: 16, 32>}, {transform_indices = @transform_1, window_bounds = array<i64: 16, 1>}, {transform_indices = @transform_2, window_bounds = array<i64: 1, 32, 64>}, {transform_indices = @transform_3, window_bounds = array<i64: 1, 32, 64>}, {transform_indices = @transform_4, window_bounds = array<i64: 1, 64, 32>}, {transform_indices = @transform_5, window_bounds = array<i64: 16, 32>}]} {
    %c0_i32 = arith.constant 0 : i32
    %0 = arith.cmpi eq, %arg1, %c0_i32 : i32
    %1 = arith.extui %0 : i1 to i32
    %c0_i32_0 = arith.constant 0 : i32
    %2 = arith.cmpi ne, %1, %c0_i32_0 : i32
    scf.if %2 {
      %cst_20 = arith.constant 0.000000e+00 : f32
      %27 = vector.broadcast %cst_20 : f32 to vector<16x32xf32>
      %c0_21 = arith.constant 0 : index
      %c0_22 = arith.constant 0 : index
      %28 = vector.load %arg8[%c0_21, %c0_22] : memref<16x32xf32, #tpu.memory_space<vmem>>, vector<16x32xf32>
      tpu.vector_store %arg8[%c0_21, %c0_22], %27 {strides = array<i32>} : memref<16x32xf32, #tpu.memory_space<vmem>>, vector<16x32xf32>,
    } else {
    }
    %c0 = arith.constant 0 : index
    %c0_1 = arith.constant 0 : index
    %3 = vector.load %arg3[%c0, %c0_1] : memref<16x32xbf16, #tpu.memory_space<vmem>>, vector<16x32xbf16>
    %c0_2 = arith.constant 0 : index
    %c0_3 = arith.constant 0 : index
    %c0_4 = arith.constant 0 : index
    %4 = vector.load %arg5[%c0_2, %c0_3, %c0_4] : memref<1x32x64xbf16, #tpu.memory_space<vmem>>, vector<1x32x64xbf16>
    %5 = vector.shape_cast %4 : vector<1x32x64xbf16> to vector<32x64xbf16>
    %cst = arith.constant dense<0.000000e+00> : vector<16x64xf32>
    %6 = tpu.matmul %3, %5, %cst {dimension_numbers = #tpu.dot_dimension_numbers<[1], [0], [0], [1], [0, 0, 1, 1], [], []>} : vector<16x32xbf16>, vector<32x64xbf16>, vector<16x64xf32> -> vector<16x64xf32>
    %c0_5 = arith.constant 0 : index
    %c0_6 = arith.constant 0 : index
    %c0_7 = arith.constant 0 : index
    %7 = vector.load %arg6[%c0_5, %c0_6, %c0_7] : memref<1x32x64xbf16, #tpu.memory_space<vmem>>, vector<1x32x64xbf16>
    %8 = vector.shape_cast %7 : vector<1x32x64xbf16> to vector<32x64xbf16>
    %cst_8 = arith.constant dense<0.000000e+00> : vector<16x64xf32>
    %9 = tpu.matmul %3, %8, %cst_8 {dimension_numbers = #tpu.dot_dimension_numbers<[1], [0], [0], [1], [0, 0, 1, 1], [], []>} : vector<16x32xbf16>, vector<32x64xbf16>, vector<16x64xf32> -> vector<16x64xf32>
    %10 = arith.negf %6 : vector<16x64xf32>
    %11 = math.exp %10 : vector<16x64xf32>
    %cst_9 = arith.constant 1.000000e+00 : f32
    %12 = vector.broadcast %cst_9 : f32 to vector<16x64xf32>
    %13 = arith.addf %12, %11 : vector<16x64xf32>
    %14 = arith.divf %12, %13 : vector<16x64xf32>
    %15 = arith.mulf %6, %14 : vector<16x64xf32>
    %16 = arith.mulf %15, %9 : vector<16x64xf32>
    %17 = arith.truncf %16 : vector<16x64xf32> to vector<16x64xbf16>
    %c0_10 = arith.constant 0 : index
    %c0_11 = arith.constant 0 : index
    %c0_12 = arith.constant 0 : index
    %18 = vector.load %arg7[%c0_10, %c0_11, %c0_12] : memref<1x64x32xbf16, #tpu.memory_space<vmem>>, vector<1x64x32xbf16>
    %19 = vector.shape_cast %18 : vector<1x64x32xbf16> to vector<64x32xbf16>
    %cst_13 = arith.constant dense<0.000000e+00> : vector<16x32xf32>
    %20 = tpu.matmul %17, %19, %cst_13 {dimension_numbers = #tpu.dot_dimension_numbers<[1], [0], [0], [1], [0, 0, 1, 1], [], []>} : vector<16x64xbf16>, vector<64x32xbf16>, vector<16x32xf32> -> vector<16x32xf32>
    %c0_14 = arith.constant 0 : index
    %c0_15 = arith.constant 0 : index
    %21 = vector.load %arg8[%c0_14, %c0_15] : memref<16x32xf32, #tpu.memory_space<vmem>>, vector<16x32xf32>
    %c0_16 = arith.constant 0 : index
    %c0_17 = arith.constant 0 : index
    %22 = vector.load %arg4[%c0_16, %c0_17] : memref<16x1xf32, #tpu.memory_space<vmem>>, vector<16x1xf32>
    %23 = vector.broadcast %22 : vector<16x1xf32> to vector<16x32xf32>
    %24 = arith.mulf %23, %20 : vector<16x32xf32>
    %25 = arith.addf %21, %24 : vector<16x32xf32>
    %c0_18 = arith.constant 0 : index
    %c0_19 = arith.constant 0 : index
    %26 = vector.load %arg8[%c0_18, %c0_19] : memref<16x32xf32, #tpu.memory_space<vmem>>, vector<16x32xf32>
    tpu.vector_store %arg8[%c0_18, %c0_19], %25 {strides = array<i32>} : memref<16x32xf32, #tpu.memory_space<vmem>>, vector<16x32xf32>,
    return
  }
  func.func @transform_0(%arg0: i32, %arg1: i32, %arg2: memref<8xi32, #tpu.memory_space<smem>>) -> (i32, i32) {
    %c0_i32 = arith.constant 0 : i32
    %c0_i32_0 = arith.constant 0 : i32
    return %arg0, %c0_i32 : i32, i32
  }
  func.func @transform_1(%arg0: i32, %arg1: i32, %arg2: memref<8xi32, #tpu.memory_space<smem>>) -> (i32, i32) {
    %c0_i32 = arith.constant 0 : i32
    %c0_i32_0 = arith.constant 0 : i32
    return %arg0, %c0_i32 : i32, i32
  }
  func.func @transform_2(%arg0: i32, %arg1: i32, %arg2: memref<8xi32, #tpu.memory_space<smem>>) -> (i32, i32, i32) {
    %0 = arith.index_cast %arg0 : i32 to index
    %1 = memref.load %arg2[%0] : memref<8xi32, #tpu.memory_space<smem>>
    %c0_i32 = arith.constant 0 : i32
    %c0_i32_0 = arith.constant 0 : i32
    return %1, %c0_i32, %arg1 : i32, i32, i32
  }
  func.func @transform_3(%arg0: i32, %arg1: i32, %arg2: memref<8xi32, #tpu.memory_space<smem>>) -> (i32, i32, i32) {
    %0 = arith.index_cast %arg0 : i32 to index
    %1 = memref.load %arg2[%0] : memref<8xi32, #tpu.memory_space<smem>>
    %c0_i32 = arith.constant 0 : i32
    %c0_i32_0 = arith.constant 0 : i32
    return %1, %c0_i32, %arg1 : i32, i32, i32
  }
  func.func @transform_4(%arg0: i32, %arg1: i32, %arg2: memref<8xi32, #tpu.memory_space<smem>>) -> (i32, i32, i32) {
    %0 = arith.index_cast %arg0 : i32 to index
    %1 = memref.load %arg2[%0] : memref<8xi32, #tpu.memory_space<smem>>
    %c0_i32 = arith.constant 0 : i32
    %c0_i32_0 = arith.constant 0 : i32
    return %1, %arg1, %c0_i32 : i32, i32, i32
  }
  func.func @transform_5(%arg0: i32, %arg1: i32, %arg2: memref<8xi32, #tpu.memory_space<smem>>) -> (i32, i32) {
    %c0_i32 = arith.constant 0 : i32
    %c0_i32_0 = arith.constant 0 : i32
    return %arg0, %c0_i32 : i32, i32
  }
}

</mosaic_0001>

<llo_original>
// kernel: custom-call.1
$region0: #{custom-call.1}
  %s0 = inlined_call_operand.vmem [shape: u32[8], index: 0, kind: output, shape index: {}]

// kernel: moe_layer.1
$region0: #{moe_layer.1}
  #allocation0 [shape = 'u32[]', space=smem, size = 0x4, offset = 0x4, fixed_abs, tag = 'smem constant byte address 0x4 - core index']
  #allocation1 [shape = 'u32[144,128]{1,0:T(1,128)}', space=vmem, size = 0x12000, scoped, tag = 'internal scratch']
  #allocation2 [shape = 's32[1]{0}', space=sflag, size = 0x4, scoped, tag = 'scoped memory for moe_layer.1']
  #allocation3 [shape = 'u8[512]{0}', space=smem, size = 0x200, scoped, tag = 'prefetched SMEM operand 0']
  %s0 = inlined_call_operand.hbm [shape: s32[8], index: 0, kind: input, shape index: {}]
  %s1 = inlined_call_operand.hbm [shape: bf16[128,32], index: 1, kind: input, shape index: {}]
  %s2 = inlined_call_operand.hbm [shape: f32[128,1], index: 2, kind: input, shape index: {}]
  %s3 = inlined_call_operand.hbm [shape: bf16[5,32,64], index: 3, kind: input, shape index: {}]
  %s4 = inlined_call_operand.hbm [shape: bf16[5,32,64], index: 4, kind: input, shape index: {}]
  %s5 = inlined_call_operand.hbm [shape: bf16[5,64,32], index: 5, kind: input, shape index: {}]
  %s6 = inlined_call_operand.hbm [shape: f32[128,32], index: 6, kind: output, shape index: {}]
  %s7 = sld [smem:[#allocation0]]
  $region77: #{moe_layer.1} parent=0
    _
  %s9 = ssub.s32 1, %s7
  %s10 = scalar_select 0, %s9, %s7
  %12 = dma.hbm_to_smem %s0, 16, [#allocation3], [#allocation2]
  %13 = dma.done [#allocation2], 16
  %14 = sfence
  $region1: #{moe_layer.1} parent=0
    #allocation4 [shape = 'u8[8192]{0}', space=vmem, size = 0x2000, scoped, tag = 'input window, operand 1']
    #allocation5 [shape = 's32[2]{0}', space=sflag, size = 0x8, scoped, tag = 'scoped memory for moe_layer.1']
    #allocation6 [shape = 's32[2]{0}', space=sflag, size = 0x8, scoped, tag = 'scoped memory for moe_layer.1']
    #allocation7 [shape = 'u8[16384]{0}', space=vmem, size = 0x4000, scoped, tag = 'input window, operand 2']
    #allocation8 [shape = 's32[2]{0}', space=sflag, size = 0x8, scoped, tag = 'scoped memory for moe_layer.1']
    #allocation9 [shape = 'u8[16384]{0}', space=vmem, size = 0x4000, scoped, tag = 'input window, operand 3']
    #allocation10 [shape = 'u8[16384]{0}', space=vmem, size = 0x4000, scoped, tag = 'input window, operand 4']
    #allocation11 [shape = 's32[2]{0}', space=sflag, size = 0x8, scoped, tag = 'scoped memory for moe_layer.1']
    #allocation12 [shape = 'u8[32768]{0}', space=vmem, size = 0x8000, scoped, tag = 'input window, operand 5']
    #allocation13 [shape = 'u8[16384]{0}', space=vmem, size = 0x4000, scoped, tag = 'output window, operand 0']
    %15 = vsyncpa [#allocation5], 0
    %s16 = scalar_lea.sflag [#allocation5], 1
    %17 = vsyncpa %s16, 0
    %18 = vsyncpa [#allocation8], 0
    %s19 = scalar_lea.sflag [#allocation8], 1
    %20 = vsyncpa %s19, 0
    %21 = vsyncpa [#allocation11], 0
    %s22 = scalar_lea.sflag [#allocation11], 1
    %23 = vsyncpa %s22, 0
    %24 = vsyncpa [#allocation6], 0
    %s25 = scalar_lea.sflag [#allocation6], 1
    %26 = vsyncpa %s25, 0
    loop: start=0, step=1, limit=10
    $region2: #{moe_layer.1} parent=1 // loop_pre_header
      _
    $region3: #{moe_layer.1} parent=1 // loop_header
      %s28 = sphi 0, %s32
      %p29 = scmp.ge.s32.totalorder %s28, 10
      %s35 = sphi 0, %s47
      %s36 = sphi 0, %s43
      %s37 = sphi 0, %s35
      %s38 = sphi 0, %s36
      %s39 = sphi 0, %s37
      %s40 = sphi 0, %s38
      %s50 = sphi 0, %s52
      %s53 = sphi 0, %s50
      %s54 = sphi 0, %s53
      %s70 = sphi 0, %s54
      %s76 = sphi 0, %s78
      %s79 = sphi 0, %s76
      %s80 = sphi 0, %s79
      %s96 = sphi 0, %s80
      %s106 = sphi 0, %s108
      %s109 = sphi 0, %s106
      %s110 = sphi 0, %s109
      %s126 = sphi 0, %s110
      %s136 = sphi 0, %s138
      %s139 = sphi 0, %s136
      %s140 = sphi 0, %s139
      %s156 = sphi 0, %s140
      %s166 = sphi 0, %s168
      %s169 = sphi 0, %s166
      %s170 = sphi 0, %s169
      %s186 = sphi 0, %s170
      %s192 = sphi 0, %s194
      %s195 = sphi 0, %s192
      %s196 = sphi 0, %s195
      %s212 = sphi 0, %s196
    $region4: #{moe_layer.1} parent=1 // loop_header_branch
      %31 = sbr.rel (%p29) target = $region8
    $region5: #{moe_layer.1} parent=1 // loop_body
      %s33 = ssub.s32 %s28, 1
      %s34 = ssub.s32 %s28, 2
      %s41 = sadd.s32 1, %s36
      %p42 = scmp.ge.s32.totalorder %s41, 1
      %s43 = scalar_select %p42, 0, %s41
      %s44 = sadd.s32 1, %s35
      %s45 = scalar_select %p42, %s44, %s35
      %p46 = scmp.ge.s32.totalorder %s45, 8
      %s47 = scalar_select %p46, 0, %s45
      %s48 = ssub.s32 %s35, %s47
      %p49 = scmp.eq.s32.totalorder %s48, 0
      %s51 = sadd.s32 %s50, 1
      %s52 = scalar_select %p49, %s50, %s51
      %p55 = pneg %p49
      %p56 = scmp.eq.s32.totalorder %s28, 7
      %p57 = por %p55, %p56
      %p58 = scmp.ne.s32.totalorder %s50, %s53
      %p59 = scmp.eq.s32.totalorder %s28, 0
      %p60 = por %p58, %p59
      %p61 = scmp.ne.s32.totalorder %s50, %s53
      %p62 = scmp.eq.s32.totalorder %s33, 7
      %p63 = por %p61, %p62
      %p64 = scmp.ne.s32.totalorder %s53, %s54
      %p65 = scmp.eq.s32.totalorder %s33, 0
      %p66 = por %p64, %p65
      %p67 = scmp.ne.s32.totalorder %s53, %s54
      %p68 = scmp.eq.s32.totalorder %s34, 7
      %p69 = por %p67, %p68
      %p71 = scmp.ne.s32.totalorder %s54, %s70
      %p72 = scmp.eq.s32.totalorder %s34, 0
      %p73 = por %p71, %p72
      %s74 = ssub.s32 %s35, %s47
      %p75 = scmp.eq.s32.totalorder %s74, 0
      %s77 = sadd.s32 %s76, 1
      %s78 = scalar_select %p75, %s76, %s77
      %p81 = pneg %p75
      %p82 = scmp.eq.s32.totalorder %s28, 7
      %p83 = por %p81, %p82
      %p84 = scmp.ne.s32.totalorder %s76, %s79
      %p85 = scmp.eq.s32.totalorder %s28, 0
      %p86 = por %p84, %p85
      %p87 = scmp.ne.s32.totalorder %s76, %s79
      %p88 = scmp.eq.s32.totalorder %s33, 7
      %p89 = por %p87, %p88
      %p90 = scmp.ne.s32.totalorder %s79, %s80
      %p91 = scmp.eq.s32.totalorder %s33, 0
      %p92 = por %p90, %p91
      %p93 = scmp.ne.s32.totalorder %s79, %s80
      %p94 = scmp.eq.s32.totalorder %s34, 7
      %p95 = por %p93, %p94
      %p97 = scmp.ne.s32.totalorder %s80, %s96
      %p98 = scmp.eq.s32.totalorder %s34, 0
      %p99 = por %p97, %p98
      %s100 = sld [smem:[#allocation3 + %s35]]
      %s101 = sld [smem:[#allocation3 + %s47]]
      %s102 = ssub.s32 %s100, %s101
      %s103 = ssub.s32 %s36, %s43
      %s104 = sor.u32 %s102, %s103
      %p105 = scmp.eq.s32.totalorder %s104, 0
      %s107 = sadd.s32 %s106, 1
      %s108 = scalar_select %p105, %s106, %s107
      %p111 = pneg %p105
      %p112 = scmp.eq.s32.totalorder %s28, 7
      %p113 = por %p111, %p112
      %p114 = scmp.ne.s32.totalorder %s106, %s109
      %p115 = scmp.eq.s32.totalorder %s28, 0
      %p116 = por %p114, %p115
      %p117 = scmp.ne.s32.totalorder %s106, %s109
      %p118 = scmp.eq.s32.totalorder %s33, 7
      %p119 = por %p117, %p118
      %p120 = scmp.ne.s32.totalorder %s109, %s110
      %p121 = scmp.eq.s32.totalorder %s33, 0
      %p122 = por %p120, %p121
      %p123 = scmp.ne.s32.totalorder %s109, %s110
      %p124 = scmp.eq.s32.totalorder %s34, 7
      %p125 = por %p123, %p124
      %p127 = scmp.ne.s32.totalorder %s110, %s126
      %p128 = scmp.eq.s32.totalorder %s34, 0
      %p129 = por %p127, %p128
      %s130 = sld [smem:[#allocation3 + %s35]]
      %s131 = sld [smem:[#allocation3 + %s47]]
      %s132 = ssub.s32 %s130, %s131
      %s133 = ssub.s32 %s36, %s43
      %s134 = sor.u32 %s132, %s133
      %p135 = scmp.eq.s32.totalorder %s134, 0
      %s137 = sadd.s32 %s136, 1
      %s138 = scalar_select %p135, %s136, %s137
      %p141 = pneg %p135
      %p142 = scmp.eq.s32.totalorder %s28, 7
      %p143 = por %p141, %p142
      %p144 = scmp.ne.s32.totalorder %s136, %s139
      %p145 = scmp.eq.s32.totalorder %s28, 0
      %p146 = por %p144, %p145
      %p147 = scmp.ne.s32.totalorder %s136, %s139
      %p148 = scmp.eq.s32.totalorder %s33, 7
      %p149 = por %p147, %p148
      %p150 = scmp.ne.s32.totalorder %s139, %s140
      %p151 = scmp.eq.s32.totalorder %s33, 0
      %p152 = por %p150, %p151
      %p153 = scmp.ne.s32.totalorder %s139, %s140
      %p154 = scmp.eq.s32.totalorder %s34, 7
      %p155 = por %p153, %p154
      %p157 = scmp.ne.s32.totalorder %s140, %s156
      %p158 = scmp.eq.s32.totalorder %s34, 0
      %p159 = por %p157, %p158
      %s160 = sld [smem:[#allocation3 + %s35]]
      %s161 = sld [smem:[#allocation3 + %s47]]
      %s162 = ssub.s32 %s160, %s161
      %s163 = ssub.s32 %s36, %s43
      %s164 = sor.u32 %s162, %s163
      %p165 = scmp.eq.s32.totalorder %s164, 0
      %s167 = sadd.s32 %s166, 1
      %s168 = scalar_select %p165, %s166, %s167
      %p171 = pneg %p165
      %p172 = scmp.eq.s32.totalorder %s28, 7
      %p173 = por %p171, %p172
      %p174 = scmp.ne.s32.totalorder %s166, %s169
      %p175 = scmp.eq.s32.totalorder %s28, 0
      %p176 = por %p174, %p175
      %p177 = scmp.ne.s32.totalorder %s166, %s169
      %p178 = scmp.eq.s32.totalorder %s33, 7
      %p179 = por %p177, %p178
      %p180 = scmp.ne.s32.totalorder %s169, %s170
      %p181 = scmp.eq.s32.totalorder %s33, 0
      %p182 = por %p180, %p181
      %p183 = scmp.ne.s32.totalorder %s169, %s170
      %p184 = scmp.eq.s32.totalorder %s34, 7
      %p185 = por %p183, %p184
      %p187 = scmp.ne.s32.totalorder %s170, %s186
      %p188 = scmp.eq.s32.totalorder %s34, 0
      %p189 = por %p187, %p188
      %s190 = ssub.s32 %s35, %s47
      %p191 = scmp.eq.s32.totalorder %s190, 0
      %s193 = sadd.s32 %s192, 1
      %s194 = scalar_select %p191, %s192, %s193
      %p197 = pneg %p191
      %p198 = scmp.eq.s32.totalorder %s28, 7
      %p199 = por %p197, %p198
      %p200 = scmp.ne.s32.totalorder %s192, %s195
      %p201 = scmp.eq.s32.totalorder %s28, 0
      %p202 = por %p200, %p201
      %p203 = scmp.ne.s32.totalorder %s192, %s195
      %p204 = scmp.eq.s32.totalorder %s33, 7
      %p205 = por %p203, %p204
      %p206 = scmp.ne.s32.totalorder %s195, %s196
      %p207 = scmp.eq.s32.totalorder %s33, 0
      %p208 = por %p206, %p207
      %p209 = scmp.ne.s32.totalorder %s195, %s196
      %p210 = scmp.eq.s32.totalorder %s34, 7
      %p211 = por %p209, %p210
      %p213 = scmp.ne.s32.totalorder %s196, %s212
      %p214 = scmp.eq.s32.totalorder %s34, 0
      %p215 = por %p213, %p214
      %p216 = scmp.le.s32.totalorder 1, %s28
      %p217 = scmp.lt.s32.totalorder %s28, 9
      %p218 = pnand %p216, %p217
      %p219 = pneg %p218
      // Predicated region
      $region9: #{moe_layer.1} parent=5 // pred_check
        _
      $region10: #{moe_layer.1} parent=5 // pred_check_branch
        %221 = sbr.rel (%p218) target = $region12
      $region11: #{moe_layer.1} parent=5 // pred_region
        %s222 = ssub.s32 %s28, 1
      $region12: #{moe_layer.1} parent=5 // pred_fallthru
        _
      %p223 = scmp.lt.s32.totalorder %s28, 8
      // Predicated region
      $region13: #{moe_layer.1} parent=5 // pred_check
        %p224 = pneg %p223
      $region14: #{moe_layer.1} parent=5 // pred_check_branch
        %226 = sbr.rel (%p224) target = $region16
      $region15: #{moe_layer.1} parent=5 // pred_region
        // Predicated region
        $region17: #{moe_layer.1} parent=15 // pred_check
          %p227 = pneg %p60
        $region18: #{moe_layer.1} parent=15 // pred_check_branch
          %229 = sbr.rel (%p227) target = $region20
        $region19: #{moe_layer.1} parent=15 // pred_region
          %s230 = sand.u32 %s50, 1
          %s231 = scalar_lea.sflag [#allocation5], %s230
          %s232 = sand.u32 %s50, 1
          %s233 = smul.addr %s232, 8
          %s234 = scalar_lea.vmem [#allocation4], %s233
          %s235 = smul.u32 2, %s35
          %s237 = ssub.s32 128, 128
          %238 = vsyncadd %s231, %s237
          %s239 = smul.addr %s235, 64
          %s240 = scalar_lea.hbm %s1, %s239
          %s241 = sshll.u32 %s234, 4
          %s242 = int_to_ptr.vmem [resolvable:$true] %s241
          %247 = dma.hbm_to_vmem [thread:$0]  %s240, 128, %s242, %s231, 64, 64, 4
        $region20: #{moe_layer.1} parent=15 // pred_fallthru
          _
        // Predicated region
        $region21: #{moe_layer.1} parent=15 // pred_check
          %p248 = pneg %p86
        $region22: #{moe_layer.1} parent=15 // pred_check_branch
          %250 = sbr.rel (%p248) target = $region24
        $region23: #{moe_layer.1} parent=15 // pred_region
          %s251 = sand.u32 %s28, 1
          %s252 = scalar_lea.sflag [#allocation8], %s251
          %s253 = sand.u32 %s76, 1
          %s254 = smul.addr %s253, 16
          %s255 = scalar_lea.vmem [#allocation7], %s254
          %s256 = smul.u32 2, %s35
          %s258 = ssub.s32 256, 256
          %259 = vsyncadd %s252, %s258
          %s260 = smul.addr %s256, 128
          %s261 = scalar_lea.hbm %s2, %s260
          %s262 = sshll.u32 %s255, 4
          %s263 = int_to_ptr.vmem [resolvable:$true] %s262
          %268 = dma.hbm_to_vmem [thread:$0]  %s261, 256, %s263, %s252, 128, 128, 8
        $region24: #{moe_layer.1} parent=15 // pred_fallthru
          _
        // Predicated region
        $region25: #{moe_layer.1} parent=15 // pred_check
          %p269 = pneg %p116
        $region26: #{moe_layer.1} parent=15 // pred_check_branch
          %271 = sbr.rel (%p269) target = $region28
        $region27: #{moe_layer.1} parent=15 // pred_region
          %s272 = sand.u32 %s28, 1
          %s273 = scalar_lea.sflag [#allocation8], %s272
          %s274 = sand.u32 %s106, 1
          %s275 = smul.addr %s274, 16
          %s276 = scalar_lea.vmem [#allocation9], %s275
          %s277 = sld [smem:[#allocation3 + %s35]]
          %s279 = ssub.s32 256, 256
          %280 = vsyncadd %s273, %s279
          %s281 = smul.addr %s277, 4
          %s282 = sadd.s32 %s36, %s281
          %s283 = smul.addr %s282, 64
          %s284 = scalar_lea.hbm %s3, %s283
          %s285 = sshll.u32 %s276, 4
          %s286 = int_to_ptr.vmem [resolvable:$true] %s285
          %291 = dma.hbm_to_vmem [thread:$0]  %s284, 256, %s286, %s273, 64, 64, 4
        $region28: #{moe_layer.1} parent=15 // pred_fallthru
          _
        // Predicated region
        $region29: #{moe_layer.1} parent=15 // pred_check
          %p292 = pneg %p146
        $region30: #{moe_layer.1} parent=15 // pred_check_branch
          %294 = sbr.rel (%p292) target = $region32
        $region31: #{moe_layer.1} parent=15 // pred_region
          %s295 = sand.u32 %s28, 1
          %s296 = scalar_lea.sflag [#allocation11], %s295
          %s297 = sand.u32 %s136, 1
          %s298 = smul.addr %s297, 16
          %s299 = scalar_lea.vmem [#allocation10], %s298
          %s300 = sld [smem:[#allocation3 + %s35]]
          %s302 = ssub.s32 256, 256
          %303 = vsyncadd %s296, %s302
          %s304 = smul.addr %s300, 4
          %s305 = sadd.s32 %s36, %s304
          %s306 = smul.addr %s305, 64
          %s307 = scalar_lea.hbm %s4, %s306
          %s308 = sshll.u32 %s299, 4
          %s309 = int_to_ptr.vmem [resolvable:$true] %s308
          %314 = dma.hbm_to_vmem [thread:$0]  %s307, 256, %s309, %s296, 64, 64, 4
        $region32: #{moe_layer.1} parent=15 // pred_fallthru
          _
        // Predicated region
        $region33: #{moe_layer.1} parent=15 // pred_check
          %p315 = pneg %p176
        $region34: #{moe_layer.1} parent=15 // pred_check_branch
          %317 = sbr.rel (%p315) target = $region36
        $region35: #{moe_layer.1} parent=15 // pred_region
          %s318 = sand.u32 %s28, 1
          %s319 = scalar_lea.sflag [#allocation11], %s318
          %s320 = sand.u32 %s166, 1
          %s321 = smul.addr %s320, 32
          %s322 = scalar_lea.vmem [#allocation12], %s321
          %s323 = sld [smem:[#allocation3 + %s35]]
          %s324 = smul.u32 8, %s36
          %s326 = ssub.s32 512, 512
          %327 = vsyncadd %s319, %s326
          %s328 = smul.addr %s323, 8
          %s329 = sadd.s32 %s324, %s328
          %s330 = smul.addr %s329, 64
          %s331 = scalar_lea.hbm %s5, %s330
          %s332 = sshll.u32 %s322, 4
          %s333 = int_to_ptr.vmem [resolvable:$true] %s332
          %338 = dma.hbm_to_vmem [thread:$0]  %s331, 512, %s333, %s319, 64, 64, 4
        $region36: #{moe_layer.1} parent=15 // pred_fallthru
          _
      $region16: #{moe_layer.1} parent=5 // pred_fallthru
        _
      %p339 = scmp.le.s32.totalorder 1, %s28
      %p340 = scmp.lt.s32.totalorder %s28, 9
      %p341 = pnand %p339, %p340
      %p342 = pneg %p341
      // Predicated region
      $region37: #{moe_layer.1} parent=5 // pred_check
        _
      $region38: #{moe_layer.1} parent=5 // pred_check_branch
        %344 = sbr.rel (%p341) target = $region40
      $region39: #{moe_layer.1} parent=5 // pred_region
        %s345 = ssub.s32 %s28, 1
        %s346 = sand.u32 %s53, 1
        %s347 = scalar_lea.sflag [#allocation5], %s346
        %s348 = sand.u32 %s53, 1
        %s349 = smul.addr %s348, 8
        %s350 = scalar_lea.vmem [#allocation4], %s349
        // Predicated region
        $region41: #{moe_layer.1} parent=39 // pred_check
          %p351 = pneg %p66
        $region42: #{moe_layer.1} parent=39 // pred_check_branch
          %353 = sbr.rel (%p351) target = $region44
        $region43: #{moe_layer.1} parent=39 // pred_region
          %354 = dma.done %s347, 128
        $region44: #{moe_layer.1} parent=39 // pred_fallthru
          _
        %s355 = sand.u32 %s33, 1
        %s356 = scalar_lea.sflag [#allocation8], %s355
        %s357 = sand.u32 %s79, 1
        %s358 = smul.addr %s357, 16
        %s359 = scalar_lea.vmem [#allocation7], %s358
        // Predicated region
        $region45: #{moe_layer.1} parent=39 // pred_check
          %p360 = pneg %p92
        $region46: #{moe_layer.1} parent=39 // pred_check_branch
          %362 = sbr.rel (%p360) target = $region48
        $region47: #{moe_layer.1} parent=39 // pred_region
          %363 = dma.done %s356, 256
        $region48: #{moe_layer.1} parent=39 // pred_fallthru
          _
        %s364 = sand.u32 %s33, 1
        %s365 = scalar_lea.sflag [#allocation8], %s364
        %s366 = sand.u32 %s109, 1
        %s367 = smul.addr %s366, 16
        %s368 = scalar_lea.vmem [#allocation9], %s367
        // Predicated region
        $region49: #{moe_layer.1} parent=39 // pred_check
          %p369 = pneg %p122
        $region50: #{moe_layer.1} parent=39 // pred_check_branch
          %371 = sbr.rel (%p369) target = $region52
        $region51: #{moe_layer.1} parent=39 // pred_region
          %372 = dma.done %s365, 256
        $region52: #{moe_layer.1} parent=39 // pred_fallthru
          _
        %s373 = sand.u32 %s33, 1
        %s374 = scalar_lea.sflag [#allocation11], %s373
        %s375 = sand.u32 %s139, 1
        %s376 = smul.addr %s375, 16
        %s377 = scalar_lea.vmem [#allocation10], %s376
        // Predicated region
        $region53: #{moe_layer.1} parent=39 // pred_check
          %p378 = pneg %p152
        $region54: #{moe_layer.1} parent=39 // pred_check_branch
          %380 = sbr.rel (%p378) target = $region56
        $region55: #{moe_layer.1} parent=39 // pred_region
          %381 = dma.done %s374, 256
        $region56: #{moe_layer.1} parent=39 // pred_fallthru
          _
        %s382 = sand.u32 %s33, 1
        %s383 = scalar_lea.sflag [#allocation11], %s382
        %s384 = sand.u32 %s169, 1
        %s385 = smul.addr %s384, 32
        %s386 = scalar_lea.vmem [#allocation12], %s385
        // Predicated region
        $region57: #{moe_layer.1} parent=39 // pred_check
          %p387 = pneg %p182
        $region58: #{moe_layer.1} parent=39 // pred_check_branch
          %389 = sbr.rel (%p387) target = $region60
        $region59: #{moe_layer.1} parent=39 // pred_region
          %390 = dma.done %s383, 512
        $region60: #{moe_layer.1} parent=39 // pred_fallthru
          _
        %s391 = sand.u32 %s53, 1
        %s392 = scalar_lea.sflag [#allocation5], %s391
        %s393 = sand.u32 %s53, 1
        %s394 = smul.addr %s393, 8
        %s395 = scalar_lea.vmem [#allocation4], %s394
        %p396 = pneg %p66
        %p397 = pneg %p63
        %s398 = sand.u32 %s33, 1
        %s399 = scalar_lea.sflag [#allocation8], %s398
        %s400 = sand.u32 %s79, 1
        %s401 = smul.addr %s400, 16
        %s402 = scalar_lea.vmem [#allocation7], %s401
        %p403 = pneg %p92
        %p404 = pneg %p89
        %s405 = sand.u32 %s33, 1
        %s406 = scalar_lea.sflag [#allocation8], %s405
        %s407 = sand.u32 %s109, 1
        %s408 = smul.addr %s407, 16
        %s409 = scalar_lea.vmem [#allocation9], %s408
        %p410 = pneg %p122
        %p411 = pneg %p119
        %s412 = sand.u32 %s33, 1
        %s413 = scalar_lea.sflag [#allocation11], %s412
        %s414 = sand.u32 %s139, 1
        %s415 = smul.addr %s414, 16
        %s416 = scalar_lea.vmem [#allocation10], %s415
        %p417 = pneg %p152
        %p418 = pneg %p149
        %s419 = sand.u32 %s33, 1
        %s420 = scalar_lea.sflag [#allocation11], %s419
        %s421 = sand.u32 %s169, 1
        %s422 = smul.addr %s421, 32
        %s423 = scalar_lea.vmem [#allocation12], %s422
        %p424 = pneg %p182
        %p425 = pneg %p179
        %p426 = pneg %p208
        %p427 = pneg %p205
        %s428 = sand.u32 %s195, 1
        %s429 = scalar_lea.sflag [#allocation6], %s428
        %s430 = sand.u32 %s195, 1
        %s431 = smul.addr %s430, 16
        %s432 = scalar_lea.vmem [#allocation13], %s431
        %s433 = smul.u32 2, %s37
        %s434 = smul.u32 2, %s37
        %s435 = sld [smem:[#allocation3 + %s37]]
        %s436 = sld [smem:[#allocation3 + %s37]]
        %s437 = sld [smem:[#allocation3 + %s37]]
        %s438 = smul.u32 8, %s38
        %s439 = smul.u32 2, %s37
        %p441 = scmp.eq.s32.totalorder %s38, 0
        // Predicated region
        $region61: #{moe_layer.1} parent=39 // pred_check
          %p442 = pneg %p441
        $region62: #{moe_layer.1} parent=39 // pred_check_branch
          %444 = sbr.rel (%p442) target = $region64
        $region63: #{moe_layer.1} parent=39 // pred_region
          %vm445 = vcmask 261120
          %446 = vst.msk [vmem:[%s432] sm:$0xff] %vm445, 0.0
          %447 = vst.msk [vmem:[%s432 + $0x8] sm:$0xff] %vm445, 0.0
        $region64: #{moe_layer.1} parent=39 // pred_fallthru
          _
        %v448 = vld [vmem:[%s350] sm:$0xf]
        %v449 = vld [vmem:[%s350 + $0x4] sm:$0xf]
        %v450 = vld [vmem:[%s368] sm:$0xf]
        %v451 = vld [vmem:[%s368 + $0x4] sm:$0xf]
        %v452 = vld [vmem:[%s368 + $0x8] sm:$0xf]
        %v453 = vld [vmem:[%s368 + $0xc] sm:$0xf]
        %v456 = vunpack.c.l.b16 %v448
        %v457 = vunpack.c.l.b16 %v449
        %v458 = vpack.c.b16 %v457, %v456
        %v463 = vunpack.c.l.b16 %v450
        %v464 = vunpack.c.l.b16 %v451
        %v465 = vunpack.c.l.b16 %v452
        %v466 = vunpack.c.l.b16 %v453
        %v467 = vpack.c.b16 %v464, %v463
        %v468 = vpack.c.b16 %v466, %v465
        %vm471 = vcmask 261120
        %v473 = vsel %vm471, %v458, 0
        %475 = vmatprep.subr.bf16.mxu0 0
        %476 = vmatpush1.bf16.msra.mxu0 %v467
        %477 = vmatprep.subr.bf16.mxu0 0
        %478 = vmatpush1.bf16.msra.mxu0 %v468
        %479 = vmatprep.subr.bf16.mxu0 0
        %480 = vmatpush1.bf16.msra.mxu0 0
        %481 = vmatprep.subr.bf16.mxu0 0
        %482 = vmatpush1.bf16.msra.mxu0 0
        %483 = vmatprep.subr.bf16.mxu0 0
        %484 = vmatpush1.bf16.msra.mxu0 0
        %485 = vmatprep.subr.bf16.mxu0 0
        %486 = vmatpush1.bf16.msra.mxu0 0
        %487 = vmatprep.subr.bf16.mxu0 0
        %488 = vmatpush1.bf16.msra.mxu0 0
        %489 = vmatprep.subr.bf16.mxu0 0
        %490 = vmatpush1.bf16.msra.mxu0 0
        %491 = vmatprep.subr.bf16.mxu0 0
        %492 = vmatpush1.bf16.msra.mxu0 0
        %493 = vmatprep.subr.bf16.mxu0 0
        %494 = vmatpush1.bf16.msra.mxu0 0
        %495 = vmatprep.subr.bf16.mxu0 0
        %496 = vmatpush1.bf16.msra.mxu0 0
        %497 = vmatprep.subr.bf16.mxu0 0
        %498 = vmatpush1.bf16.msra.mxu0 0
        %499 = vmatprep.subr.bf16.mxu0 0
        %500 = vmatpush1.bf16.msra.mxu0 0
        %501 = vmatprep.subr.bf16.mxu0 0
        %502 = vmatpush1.bf16.msra.mxu0 0
        %503 = vmatprep.subr.bf16.mxu0 0
        %504 = vmatpush1.bf16.msra.mxu0 0
        %505 = vmatprep.subr.bf16.mxu0 0
        %506 = vmatpush1.bf16.msra.mxu0 0
        %507 = vmatprep.mubr.bf16.mxu0 0
        %508 = vmatmul.mubr.bf16.gmra.mrb[0].mxu0 %v473
        %v509 = vpop.f32.mrb[0].mxu0
        %v510 = vadd.f32 0.0, %v509
        %v511 = vpop.f32.mrb[0].mxu0
        %v512 = vpop.f32.mrb[0].mxu0
        %v513 = vadd.f32 0.0, %v512
        %v514 = vpop.f32.mrb[0].mxu0
        %515 = vdwg.mxu0
        %v516 = vld [vmem:[%s377] sm:$0xf]
        %v517 = vld [vmem:[%s377 + $0x4] sm:$0xf]
        %v518 = vld [vmem:[%s377 + $0x8] sm:$0xf]
        %v519 = vld [vmem:[%s377 + $0xc] sm:$0xf]
        %v524 = vunpack.c.l.b16 %v516
        %v525 = vunpack.c.l.b16 %v517
        %v526 = vunpack.c.l.b16 %v518
        %v527 = vunpack.c.l.b16 %v519
        %v528 = vpack.c.b16 %v525, %v524
        %v529 = vpack.c.b16 %v527, %v526
        %532 = vmatprep.subr.bf16.mxu0 0
        %533 = vmatpush1.bf16.msra.mxu0 %v528
        %534 = vmatprep.subr.bf16.mxu0 0
        %535 = vmatpush1.bf16.msra.mxu0 %v529
        %536 = vmatprep.subr.bf16.mxu0 0
        %537 = vmatpush1.bf16.msra.mxu0 0
        %538 = vmatprep.subr.bf16.mxu0 0
        %539 = vmatpush1.bf16.msra.mxu0 0
        %540 = vmatprep.subr.bf16.mxu0 0
        %541 = vmatpush1.bf16.msra.mxu0 0
        %542 = vmatprep.subr.bf16.mxu0 0
        %543 = vmatpush1.bf16.msra.mxu0 0
        %544 = vmatprep.subr.bf16.mxu0 0
        %545 = vmatpush1.bf16.msra.mxu0 0
        %546 = vmatprep.subr.bf16.mxu0 0
        %547 = vmatpush1.bf16.msra.mxu0 0
        %548 = vmatprep.subr.bf16.mxu0 0
        %549 = vmatpush1.bf16.msra.mxu0 0
        %550 = vmatprep.subr.bf16.mxu0 0
        %551 = vmatpush1.bf16.msra.mxu0 0
        %552 = vmatprep.subr.bf16.mxu0 0
        %553 = vmatpush1.bf16.msra.mxu0 0
        %554 = vmatprep.subr.bf16.mxu0 0
        %555 = vmatpush1.bf16.msra.mxu0 0
        %556 = vmatprep.subr.bf16.mxu0 0
        %557 = vmatpush1.bf16.msra.mxu0 0
        %558 = vmatprep.subr.bf16.mxu0 0
        %559 = vmatpush1.bf16.msra.mxu0 0
        %560 = vmatprep.subr.bf16.mxu0 0
        %561 = vmatpush1.bf16.msra.mxu0 0
        %562 = vmatprep.subr.bf16.mxu0 0
        %563 = vmatpush1.bf16.msra.mxu0 0
        %564 = vmatprep.mubr.bf16.mxu0 0
        %565 = vmatmul.mubr.bf16.gmra.mrb[0].mxu0 %v473
        %v566 = vpop.f32.mrb[0].mxu0
        %v567 = vadd.f32 0.0, %v566
        %v568 = vpop.f32.mrb[0].mxu0
        %v569 = vpop.f32.mrb[0].mxu0
        %v570 = vadd.f32 0.0, %v569
        %v571 = vpop.f32.mrb[0].mxu0
        %572 = vdwg.mxu0
        %v573 = vxor.u32 %v510, 2147483648
        %v574 = vxor.u32 %v513, 2147483648
        %v575 = vmul.f32 %v573, 1.442695
        %v576 = vpow.pop %v575
        %v577 = vmul.f32 %v574, 1.442695
        %v578 = vpow.pop %v577
        %v579 = vadd.f32 %v576, 1.0
        %v580 = vadd.f32 %v578, 1.0
        %v581 = vrcp.pop %v579
        %v582 = vmul.f32 1.0, %v581
        %v583 = vrcp.pop %v580
        %v584 = vmul.f32 1.0, %v583
        %v585 = vmul.f32 %v510, %v582
        %v586 = vmul.f32 %v513, %v584
        %v587 = vmul.f32 %v585, %v567
        %v588 = vmul.f32 %v586, %v570
        %v589 = vpack.c.bf16 %v588, %v587
        %v590 = vld [vmem:[%s386] sm:$0xf]
        %v591 = vld [vmem:[%s386 + $0x4] sm:$0xf]
        %v592 = vld [vmem:[%s386 + $0x8] sm:$0xf]
        %v593 = vld [vmem:[%s386 + $0xc] sm:$0xf]
        %v594 = vld [vmem:[%s386 + $0x10] sm:$0xf]
        %v595 = vld [vmem:[%s386 + $0x14] sm:$0xf]
        %v596 = vld [vmem:[%s386 + $0x18] sm:$0xf]
        %v597 = vld [vmem:[%s386 + $0x1c] sm:$0xf]
        %v606 = vunpack.c.l.b16 %v590
        %v607 = vunpack.c.l.b16 %v591
        %v608 = vunpack.c.l.b16 %v592
        %v609 = vunpack.c.l.b16 %v593
        %v610 = vunpack.c.l.b16 %v594
        %v611 = vunpack.c.l.b16 %v595
        %v612 = vunpack.c.l.b16 %v596
        %v613 = vunpack.c.l.b16 %v597
        %v614 = vpack.c.b16 %v607, %v606
        %v615 = vpack.c.b16 %v609, %v608
        %v616 = vpack.c.b16 %v611, %v610
        %v617 = vpack.c.b16 %v613, %v612
        %vm622 = vcmask 523264
        %v624 = vsel %vm622, %v589, 0
        %626 = vmatprep.subr.bf16.mxu0 0
        %627 = vmatpush1.bf16.msra.mxu0 %v614
        %628 = vmatprep.subr.bf16.mxu0 0
        %629 = vmatpush1.bf16.msra.mxu0 %v615
        %630 = vmatprep.subr.bf16.mxu0 0
        %631 = vmatpush1.bf16.msra.mxu0 %v616
        %632 = vmatprep.subr.bf16.mxu0 0
        %633 = vmatpush1.bf16.msra.mxu0 %v617
        %634 = vmatprep.subr.bf16.mxu0 0
        %635 = vmatpush1.bf16.msra.mxu0 0
        %636 = vmatprep.subr.bf16.mxu0 0
        %637 = vmatpush1.bf16.msra.mxu0 0
        %638 = vmatprep.subr.bf16.mxu0 0
        %639 = vmatpush1.bf16.msra.mxu0 0
        %640 = vmatprep.subr.bf16.mxu0 0
        %641 = vmatpush1.bf16.msra.mxu0 0
        %642 = vmatprep.subr.bf16.mxu0 0
        %643 = vmatpush1.bf16.msra.mxu0 0
        %644 = vmatprep.subr.bf16.mxu0 0
        %645 = vmatpush1.bf16.msra.mxu0 0
        %646 = vmatprep.subr.bf16.mxu0 0
        %647 = vmatpush1.bf16.msra.mxu0 0
        %648 = vmatprep.subr.bf16.mxu0 0
        %649 = vmatpush1.bf16.msra.mxu0 0
        %650 = vmatprep.subr.bf16.mxu0 0
        %651 = vmatpush1.bf16.msra.mxu0 0
        %652 = vmatprep.subr.bf16.mxu0 0
        %653 = vmatpush1.bf16.msra.mxu0 0
        %654 = vmatprep.subr.bf16.mxu0 0
        %655 = vmatpush1.bf16.msra.mxu0 0
        %656 = vmatprep.subr.bf16.mxu0 0
        %657 = vmatpush1.bf16.msra.mxu0 0
        %658 = vmatprep.mubr.bf16.mxu0 0
        %659 = vmatmul.mubr.bf16.gmra.mrb[0].mxu0 %v624
        %v660 = vpop.f32.mrb[0].mxu0
        %v661 = vadd.f32 0.0, %v660
        %v662 = vpop.f32.mrb[0].mxu0
        %v663 = vpop.f32.mrb[0].mxu0
        %v664 = vadd.f32 0.0, %v663
        %v665 = vpop.f32.mrb[0].mxu0
        %666 = vdwg.mxu0
        %v667 = vld [vmem:[%s432] sm:$0xff]
        %v668 = vld [vmem:[%s432 + $0x8] sm:$0xff]
        %v669 = vld [vmem:[%s359] sm:$0xff]
        %v670 = vld [vmem:[%s359 + $0x8] sm:$0xff]
        %672 = vset.pattern.permute.xlu0 0
        %673 = vperm.xlu0 %672, %v669
        %v674 = vpop.permute.xlu0 %673
        %677 = vset.pattern.permute.xlu0 0
        %678 = vperm.xlu0 %677, %v670
        %v679 = vpop.permute.xlu0 %678
        %v681 = vmul.f32 %v674, %v661
        %v682 = vmul.f32 %v679, %v664
        %v683 = vadd.f32 %v667, %v681
        %v684 = vadd.f32 %v668, %v682
        %685 = vst.msk [vmem:[%s432] sm:$0xff] %vm471, %v683
        %686 = vst.msk [vmem:[%s432 + $0x8] sm:$0xff] %vm471, %v684
        %s687 = sand.u32 %s195, 1
        %s688 = scalar_lea.sflag [#allocation6], %s687
        %s689 = sand.u32 %s195, 1
        %s690 = smul.addr %s689, 16
        %s691 = scalar_lea.vmem [#allocation13], %s690
        // Predicated region
        $region65: #{moe_layer.1} parent=39 // pred_check
          %p692 = pneg %p205
        $region66: #{moe_layer.1} parent=39 // pred_check_branch
          %694 = sbr.rel (%p692) target = $region68
        $region67: #{moe_layer.1} parent=39 // pred_region
          %s695 = smul.u32 2, %s37
          %s697 = ssub.s32 256, 256
          %698 = vsyncadd %s688, %s697
          %s699 = smul.addr %s695, 128
          %s700 = scalar_lea.hbm %s6, %s699
          %s701 = sshll.u32 %s691, 4
          %s702 = int_to_ptr.vmem [resolvable:$true] %s701
          %707 = dma.vmem_to_hbm [thread:$0]  %s702, 256, %s700, %s688, 128, 128, 8
        $region68: #{moe_layer.1} parent=39 // pred_fallthru
          _
      $region40: #{moe_layer.1} parent=5 // pred_fallthru
        _
      %p708 = scmp.le.s32.totalorder 2, %s28
      // Predicated region
      $region69: #{moe_layer.1} parent=5 // pred_check
        %p709 = pneg %p708
      $region70: #{moe_layer.1} parent=5 // pred_check_branch
        %711 = sbr.rel (%p709) target = $region72
      $region71: #{moe_layer.1} parent=5 // pred_region
        %s712 = ssub.s32 %s28, 2
        // Predicated region
        $region73: #{moe_layer.1} parent=71 // pred_check
          %p713 = pneg %p211
        $region74: #{moe_layer.1} parent=71 // pred_check_branch
          %715 = sbr.rel (%p713) target = $region76
        $region75: #{moe_layer.1} parent=71 // pred_region
          %s716 = sand.u32 %s196, 1
          %s717 = scalar_lea.sflag [#allocation6], %s716
          %s718 = sand.u32 %s196, 1
          %s719 = smul.addr %s718, 16
          %s720 = scalar_lea.vmem [#allocation13], %s719
          %721 = dma.done %s717, 256
        $region76: #{moe_layer.1} parent=71 // pred_fallthru
          _
      $region72: #{moe_layer.1} parent=5 // pred_fallthru
        _
    $region6: #{moe_layer.1} parent=1 // loop_footer
      %s32 = sadd.s32 1, %s28
    $region7: #{moe_layer.1} parent=1 // loop_footer_branch
      %27 = sbr.rel target = $region3
    $region8: #{moe_layer.1} parent=1 // loop_exit
      _
    %722 = vsyncpa [#allocation5], 1
    %s723 = scalar_lea.sflag [#allocation5], 1
    %724 = vsyncpa %s723, 1
    %725 = vsyncpa [#allocation8], 1
    %s726 = scalar_lea.sflag [#allocation8], 1
    %727 = vsyncpa %s726, 1
    %728 = vsyncpa [#allocation11], 1
    %s729 = scalar_lea.sflag [#allocation11], 1
    %730 = vsyncpa %s729, 1
    %731 = vsyncpa [#allocation6], 1
    %s732 = scalar_lea.sflag [#allocation6], 1
    %733 = vsyncpa %s732, 1

</llo_original>
